<compile_context>
chip_gen: v6e
topology: v6e:2x2x1
jax: 0.10.0
libtpu: 0.0.40
codegen_flags: <defaults>
</compile_context>

<pallas_src>
import math

import jax
import jax.numpy as jnp
from jax.experimental import pallas as pl
from jax.experimental.pallas import tpu as pltpu


def _round_up(x, m):
    return ((x + m - 1) // m) * m


def _pad_to(a, shape):
    pads = [(0, t - s) for s, t in zip(a.shape, shape)]
    if all(p == (0, 0) for p in pads):
        return a
    return jnp.pad(a, pads)


def fc_block_kernel(x_ref, w1_ref, w2_ref, w3_ref, b_ref, o_ref):
    """Fused fc1 -> ReLU -> fc2 -> ReLU -> fc3 over one batch tile.

    Weights hold the MXU feed dtype (bf16 or f32); x is cast on-chip.  All
    matmuls accumulate in f32 (preferred_element_type); bias-add / ReLU run in
    f32 and the cast back to the feed dtype is fused into the ReLU.
    """
    feed = w1_ref.dtype
    b = b_ref[...]                                   # (3, fp) f32: b1, b2, b3
    x = x_ref[...].astype(feed)                      # free cast under MXU slot

    h = jnp.dot(x, w1_ref[...], preferred_element_type=jnp.float32)
    h = jnp.maximum(h + b[0:1, :], 0.0).astype(feed)   # relu1; dropout1 = identity

    h = jnp.dot(h, w2_ref[...], preferred_element_type=jnp.float32)
    h = jnp.maximum(h + b[1:2, :], 0.0).astype(feed)   # relu2; dropout2 = identity

    h = jnp.dot(h, w3_ref[...], preferred_element_type=jnp.float32)
    o_ref[...] = (h + b[2:3, :]).astype(o_ref.dtype)


def prepare_fc_block_params(params, *, mxu_dtype=jnp.bfloat16):
    """Pad + cast weights/biases once (cache the result across forwards).

    Zero padding is numerically exact for matmul + bias + ReLU; the forward
    wrapper slices the padded output back.
    """
    in_f, out_f = params["w1"].shape
    kp = _round_up(in_f, 128)                       # padded contraction depth
    fp = _round_up(out_f, 128)                      # padded feature width
    w1 = _pad_to(params["w1"], (kp, fp)).astype(mxu_dtype)
    w2 = _pad_to(params["w2"], (fp, fp)).astype(mxu_dtype)
    w3 = _pad_to(params["w3"], (fp, fp)).astype(mxu_dtype)
    b = jnp.concatenate(
        [_pad_to(params[k].reshape(1, -1), (1, fp)) for k in ("b1", "b2", "b3")],
        axis=0,
    ).astype(jnp.float32)                           # (3, fp), one operand
    return {
        "w1": w1, "w2": w2, "w3": w3, "b": b,
        "in_features": in_f, "out_features": out_f,
        "kp": kp, "fp": fp, "mxu_dtype": mxu_dtype,
    }


def _vmem_limit_bytes(resident_bytes, streamed_bytes):
    try:
        phys = pltpu.get_tpu_info().vmem_capacity_bytes
    except Exception:
        phys = 64 << 20  # conservative: v7x has the smallest physical VMEM
    want = int(resident_bytes + streamed_bytes) + (8 << 20)   # + headroom
    return int(max(32 << 20, min(want, int(phys * 0.9))))


def fc_block_forward(x, prepped, *, tile_b=None):
    """x: (B, in_features).  prepped: output of prepare_fc_block_params."""
    B, in_f = x.shape
    assert in_f == prepped["in_features"], "x feature dim mismatch"
    kp, fp = prepped["kp"], prepped["fp"]
    out_f = prepped["out_features"]
    feed = prepped["mxu_dtype"]
    feed_sz = jnp.dtype(feed).itemsize

    # Batch tile: one step for small (weight/DMA-bound) batches; >=2 steps of
    # 128/256 rows when compute-bound so both v7x TensorCores get work and the
    # 256-wide MXU M dimension on v6e/v7x is filled.
    sub = 16 if feed_sz < 4 else 8          # bf16 packs 2 rows per sublane
    if tile_b is None:
        if B >= 512:
            tile_b = 256
        elif B >= 256:
            tile_b = 128
        else:
            tile_b = B
    tb = _round_up(max(1, min(tile_b, B)), sub)
    bp = _round_up(B, tb)
    grid = (bp // tb,)

    xp = _pad_to(x, (bp, kp))               # no-op when already aligned; keeps dtype

    w1, w2, w3, b = prepped["w1"], prepped["w2"], prepped["w3"], prepped["b"]

    # VMEM budget: single-copy resident weights + double-buffered x/out tiles
    # + live f32/feed intermediates.
    resident = w1.nbytes + w2.nbytes + w3.nbytes + 8 * fp * 4
    streamed = 2 * tb * kp * xp.dtype.itemsize + 2 * tb * fp * x.dtype.itemsize
    acts = 2 * tb * fp * (4 + feed_sz)
    vmem_limit = _vmem_limit_bytes(resident, streamed + acts)

    flops = 2 * bp * (kp * fp + 2 * fp * fp)
    bytes_accessed = (xp.nbytes + w1.nbytes + w2.nbytes + w3.nbytes + b.nbytes
                      + bp * fp * x.dtype.itemsize)
    cost = pl.CostEstimate(flops=flops, transcendentals=0,
                           bytes_accessed=bytes_accessed)

    # Whole-array, single resident VMEM copy (no per-step pipelining / double
    # buffering) for operands whose block never changes.
    resident_spec = pl.BlockSpec(memory_space=pltpu.MemorySpace.VMEM)

    out_p = pl.pallas_call(
        fc_block_kernel,
        out_shape=jax.ShapeDtypeStruct((bp, fp), x.dtype),
        grid_spec=pltpu.PrefetchScalarGridSpec(
            num_scalar_prefetch=0,
            grid=grid,
            in_specs=[
                pl.BlockSpec((tb, kp), lambda i: (i, 0)),   # x batch tile (pipelined)
                resident_spec,                              # w1
                resident_spec,                              # w2
                resident_spec,                              # w3
                resident_spec,                              # packed biases (3, fp)
            ],
            out_specs=pl.BlockSpec((tb, fp), lambda i: (i, 0)),
        ),
        compiler_params=pltpu.CompilerParams(
            # Batch axis is embarrassingly parallel: lets v7x shard the grid
            # across its 2 TensorCores; no-op on v5e/v6e.
            dimension_semantics=("parallel",),
            vmem_limit_bytes=vmem_limit,
        ),
        cost_estimate=cost,
    )(xp, w1, w2, w3, b)

    return out_p[:B, :out_f]


def init_fc_block_params(key, in_features, out_features, dtype=jnp.float32):
    """Deterministic init mimicking PyTorch nn.Linear default U[-1/sqrt(fan_in), +]."""
    ks = jax.random.split(key, 6)

    def linear(kw, kb, fan_in, fan_out):
        bound = 1.0 / math.sqrt(fan_in)
        w = jax.random.uniform(kw, (fan_in, fan_out), dtype, -bound, bound)
        b = jax.random.uniform(kb, (1, fan_out), dtype, -bound, bound)
        return w, b

    w1, b1 = linear(ks[0], ks[1], in_features, out_features)
    w2, b2 = linear(ks[2], ks[3], out_features, out_features)
    w3, b3 = linear(ks[4], ks[5], out_features, out_features)
    return {"w1": w1, "b1": b1, "w2": w2, "b2": b2, "w3": w3, "b3": b3}


def fc_block_reference(x, p):
    """Pure-JAX reference (eval-mode dropout = identity)."""
    h = jnp.maximum(x @ p["w1"] + p["b1"], 0.0)
    h = jnp.maximum(h @ p["w2"] + p["b2"], 0.0)
    return h @ p["w3"] + p["b3"]


if __name__ == "__main__":
    key = jax.random.PRNGKey(0)
    k_x, k_p = jax.random.split(key)

    batch = 16
    in_features = 32
    out_features = 64

    x = jax.random.normal(k_x, (batch, in_features), dtype=jnp.float32)
    params = init_fc_block_params(k_p, in_features, out_features)
    ref = fc_block_reference(x, params)

    # Default path: bf16 MXU feed, f32 accumulation + f32 epilogue.
    prepped_bf16 = prepare_fc_block_params(params, mxu_dtype=jnp.bfloat16)
    out_bf16 = jax.block_until_ready(fc_block_forward(x, prepped_bf16))
    assert out_bf16.shape == (batch, out_features)
    assert jnp.allclose(out_bf16, ref, atol=5e-2, rtol=5e-2), "bf16 path mismatch"

    # Full f32 path for tighter numerical verification of the fused kernel.
    prepped_f32 = prepare_fc_block_params(params, mxu_dtype=jnp.float32)
    out_f32 = jax.block_until_ready(fc_block_forward(x, prepped_f32))
    assert out_f32.shape == (batch, out_features)
    assert jnp.allclose(out_f32, ref, atol=1e-4, rtol=1e-4), "f32 path mismatch"

    print("KERNEL_OK")
</pallas_src>

<mosaic_0001>
module attributes {stable_mosaic.version = 11 : i64} {
  func.func @fc_block_kernel(%arg0: i32, %arg1: memref<16x128xf32, #tpu.memory_space<vmem>>, %arg2: memref<128x128xbf16, #tpu.memory_space<vmem>>, %arg3: memref<128x128xbf16, #tpu.memory_space<vmem>>, %arg4: memref<128x128xbf16, #tpu.memory_space<vmem>>, %arg5: memref<3x128xf32, #tpu.memory_space<vmem>>, %arg6: memref<16x128xf32, #tpu.memory_space<vmem>>) attributes {dimension_semantics = [#tpu.dimension_semantics<parallel>], iteration_bounds = array<i64: 1>, scalar_prefetch = 0 : i64, scratch_operands = 0 : i64, tpu.core_type = #tpu.core_type<tc>, window_params = [{transform_indices = @transform_0, window_bounds = array<i64: 16, 128>}, {pipeline_mode = #tpu.pipeline_mode<synchronous>, transform_indices = @transform_1, window_bounds = array<i64: 128, 128>}, {pipeline_mode = #tpu.pipeline_mode<synchronous>, transform_indices = @transform_2, window_bounds = array<i64: 128, 128>}, {pipeline_mode = #tpu.pipeline_mode<synchronous>, transform_indices = @transform_3, window_bounds = array<i64: 128, 128>}, {pipeline_mode = #tpu.pipeline_mode<synchronous>, transform_indices = @transform_4, window_bounds = array<i64: 3, 128>}, {transform_indices = @transform_5, window_bounds = array<i64: 16, 128>}]} {
    %c0 = arith.constant 0 : index
    %c0_0 = arith.constant 0 : index
    %0 = vector.load %arg5[%c0, %c0_0] : memref<3x128xf32, #tpu.memory_space<vmem>>, vector<3x128xf32>
    %c0_1 = arith.constant 0 : index
    %c0_2 = arith.constant 0 : index
    %1 = vector.load %arg1[%c0_1, %c0_2] : memref<16x128xf32, #tpu.memory_space<vmem>>, vector<16x128xf32>
    %2 = arith.truncf %1 : vector<16x128xf32> to vector<16x128xbf16>
    %c0_3 = arith.constant 0 : index
    %c0_4 = arith.constant 0 : index
    %3 = vector.load %arg2[%c0_3, %c0_4] : memref<128x128xbf16, #tpu.memory_space<vmem>>, vector<128x128xbf16>
    %cst = arith.constant dense<0.000000e+00> : vector<16x128xf32>
    %4 = tpu.matmul %2, %3, %cst {dimension_numbers = #tpu.dot_dimension_numbers<[1], [0], [0], [1], [0, 0, 1, 1], [], []>} : vector<16x128xbf16>, vector<128x128xbf16>, vector<16x128xf32> -> vector<16x128xf32>
    %5 = vector.extract_strided_slice %0 {offsets = [0, 0], sizes = [1, 128], strides = [1, 1]} : vector<3x128xf32> to vector<1x128xf32>
    %6 = vector.broadcast %5 : vector<1x128xf32> to vector<16x128xf32>
    %7 = arith.addf %4, %6 : vector<16x128xf32>
    %cst_5 = arith.constant 0.000000e+00 : f32
    %8 = vector.broadcast %cst_5 : f32 to vector<16x128xf32>
    %9 = arith.maximumf %7, %8 : vector<16x128xf32>
    %10 = arith.truncf %9 : vector<16x128xf32> to vector<16x128xbf16>
    %c0_6 = arith.constant 0 : index
    %c0_7 = arith.constant 0 : index
    %11 = vector.load %arg3[%c0_6, %c0_7] : memref<128x128xbf16, #tpu.memory_space<vmem>>, vector<128x128xbf16>
    %cst_8 = arith.constant dense<0.000000e+00> : vector<16x128xf32>
    %12 = tpu.matmul %10, %11, %cst_8 {dimension_numbers = #tpu.dot_dimension_numbers<[1], [0], [0], [1], [0, 0, 1, 1], [], []>} : vector<16x128xbf16>, vector<128x128xbf16>, vector<16x128xf32> -> vector<16x128xf32>
    %13 = vector.extract_strided_slice %0 {offsets = [1, 0], sizes = [1, 128], strides = [1, 1]} : vector<3x128xf32> to vector<1x128xf32>
    %14 = vector.broadcast %13 : vector<1x128xf32> to vector<16x128xf32>
    %15 = arith.addf %12, %14 : vector<16x128xf32>
    %cst_9 = arith.constant 0.000000e+00 : f32
    %16 = vector.broadcast %cst_9 : f32 to vector<16x128xf32>
    %17 = arith.maximumf %15, %16 : vector<16x128xf32>
    %18 = arith.truncf %17 : vector<16x128xf32> to vector<16x128xbf16>
    %c0_10 = arith.constant 0 : index
    %c0_11 = arith.constant 0 : index
    %19 = vector.load %arg4[%c0_10, %c0_11] : memref<128x128xbf16, #tpu.memory_space<vmem>>, vector<128x128xbf16>
    %cst_12 = arith.constant dense<0.000000e+00> : vector<16x128xf32>
    %20 = tpu.matmul %18, %19, %cst_12 {dimension_numbers = #tpu.dot_dimension_numbers<[1], [0], [0], [1], [0, 0, 1, 1], [], []>} : vector<16x128xbf16>, vector<128x128xbf16>, vector<16x128xf32> -> vector<16x128xf32>
    %21 = vector.extract_strided_slice %0 {offsets = [2, 0], sizes = [1, 128], strides = [1, 1]} : vector<3x128xf32> to vector<1x128xf32>
    %22 = vector.broadcast %21 : vector<1x128xf32> to vector<16x128xf32>
    %23 = arith.addf %20, %22 : vector<16x128xf32>
    %c0_13 = arith.constant 0 : index
    %c0_14 = arith.constant 0 : index
    %24 = vector.load %arg6[%c0_13, %c0_14] : memref<16x128xf32, #tpu.memory_space<vmem>>, vector<16x128xf32>
    tpu.vector_store %arg6[%c0_13, %c0_14], %23 {strides = array<i32>} : memref<16x128xf32, #tpu.memory_space<vmem>>, vector<16x128xf32>,
    return
  }
  func.func @transform_0(%arg0: i32) -> (i32, i32) {
    %c0_i32 = arith.constant 0 : i32
    %c0_i32_0 = arith.constant 0 : i32
    return %arg0, %c0_i32 : i32, i32
  }
  func.func @transform_1(%arg0: i32) -> (i32, i32) {
    %c0_i32 = arith.constant 0 : i32
    %c0_i32_0 = arith.constant 0 : i32
    %c0_i32_1 = arith.constant 0 : i32
    return %c0_i32, %c0_i32_0 : i32, i32
  }
  func.func @transform_2(%arg0: i32) -> (i32, i32) {
    %c0_i32 = arith.constant 0 : i32
    %c0_i32_0 = arith.constant 0 : i32
    %c0_i32_1 = arith.constant 0 : i32
    return %c0_i32, %c0_i32_0 : i32, i32
  }
  func.func @transform_3(%arg0: i32) -> (i32, i32) {
    %c0_i32 = arith.constant 0 : i32
    %c0_i32_0 = arith.constant 0 : i32
    %c0_i32_1 = arith.constant 0 : i32
    return %c0_i32, %c0_i32_0 : i32, i32
  }
  func.func @transform_4(%arg0: i32) -> (i32, i32) {
    %c0_i32 = arith.constant 0 : i32
    %c0_i32_0 = arith.constant 0 : i32
    %c0_i32_1 = arith.constant 0 : i32
    return %c0_i32, %c0_i32_0 : i32, i32
  }
  func.func @transform_5(%arg0: i32) -> (i32, i32) {
    %c0_i32 = arith.constant 0 : i32
    %c0_i32_0 = arith.constant 0 : i32
    return %arg0, %c0_i32 : i32, i32
  }
}

</mosaic_0001>

<llo_original>
// kernel: tpu_custom_call.1
$region0: #{tpu_custom_call.1}
  #allocation0 [shape = 'u32[]', space=smem, size = 0x4, offset = 0x4, fixed_abs, tag = 'smem constant byte address 0x4 - core index']
  #allocation1 [shape = 'u32[144,128]{1,0:T(1,128)}', space=vmem, size = 0x12000, scoped, tag = 'internal scratch']
  %s0 = inlined_call_operand.hbm [shape: f32[16,128], index: 0, kind: input, shape index: {}]
  %s1 = inlined_call_operand.hbm [shape: bf16[128,128], index: 1, kind: input, shape index: {}]
  %s2 = inlined_call_operand.hbm [shape: bf16[128,128], index: 2, kind: input, shape index: {}]
  %s3 = inlined_call_operand.hbm [shape: bf16[128,128], index: 3, kind: input, shape index: {}]
  %s4 = inlined_call_operand.vmem [shape: f32[3,128], index: 4, kind: input, shape index: {}]
  %s5 = inlined_call_operand.hbm [shape: f32[16,128], index: 5, kind: output, shape index: {}]
  %s6 = sld [smem:[#allocation0]]
  $region46: #{tpu_custom_call.1} parent=0
    _
  %s8 = ssub.s32 1, %s6
  %s9 = scalar_select 0, %s8, %s6
  $region1: #{tpu_custom_call.1} parent=0
    #allocation2 [shape = 'u8[8192]{0}', space=vmem, size = 0x2000, scoped, tag = 'input window, operand 0, single buffered']
    #allocation3 [shape = 's32[1]{0}', space=sflag, size = 0x4, scoped, tag = 'scoped memory for tpu_custom_call.1']
    #allocation4 [shape = 's32[1]{0}', space=sflag, size = 0x4, scoped, tag = 'scoped memory for tpu_custom_call.1']
    #allocation5 [shape = 'u8[32768]{0}', space=vmem, size = 0x8000, scoped, tag = 'input window, operand 1, single buffered']
    #allocation6 [shape = 's32[1]{0}', space=sflag, size = 0x4, scoped, tag = 'scoped memory for tpu_custom_call.1']
    #allocation7 [shape = 'u8[32768]{0}', space=vmem, size = 0x8000, scoped, tag = 'input window, operand 2, single buffered']
    #allocation8 [shape = 'u8[32768]{0}', space=vmem, size = 0x8000, scoped, tag = 'input window, operand 3, single buffered']
    #allocation9 [shape = 's32[1]{0}', space=sflag, size = 0x4, scoped, tag = 'scoped memory for tpu_custom_call.1']
    #allocation10 [shape = 'u8[8192]{0}', space=vmem, size = 0x2000, scoped, tag = 'output window, operand 0, single buffered']
    %10 = vsyncpa [#allocation3], 0
    %11 = vsyncpa [#allocation6], 0
    %12 = vsyncpa [#allocation9], 0
    %13 = vsyncpa [#allocation4], 0
    // Predicated region
    $region2: #{tpu_custom_call.1} parent=1 // pred_check
      _
    $region3: #{tpu_custom_call.1} parent=1 // pred_check_branch
      %15 = sbr.rel (0) target = $region5
    $region4: #{tpu_custom_call.1} parent=1 // pred_region
      %s17 = ssub.s32 256, 256
      %18 = vsyncadd [#allocation3], %s17
      %s19 = sshll.u32 [#allocation2], 4
      %s20 = int_to_ptr.vmem [resolvable:$true] %s19
      %25 = dma.hbm_to_vmem [thread:$0]  %s0, 256, %s20, [#allocation3], 128, 128, 8
    $region5: #{tpu_custom_call.1} parent=1 // pred_fallthru
      _
    // Predicated region
    $region6: #{tpu_custom_call.1} parent=1 // pred_check
      _
    $region7: #{tpu_custom_call.1} parent=1 // pred_check_branch
      %27 = sbr.rel (0) target = $region9
    $region8: #{tpu_custom_call.1} parent=1 // pred_region
      %s29 = ssub.s32 1024, 1024
      %30 = vsyncadd [#allocation6], %s29
      %s31 = sshll.u32 [#allocation5], 4
      %s32 = int_to_ptr.vmem [resolvable:$true] %s31
      %37 = dma.hbm_to_vmem [thread:$0]  %s1, 1024, %s32, [#allocation6], 64, 64, 4
    $region9: #{tpu_custom_call.1} parent=1 // pred_fallthru
      _
    // Predicated region
    $region10: #{tpu_custom_call.1} parent=1 // pred_check
      _
    $region11: #{tpu_custom_call.1} parent=1 // pred_check_branch
      %39 = sbr.rel (0) target = $region13
    $region12: #{tpu_custom_call.1} parent=1 // pred_region
      %s41 = ssub.s32 1024, 1024
      %42 = vsyncadd [#allocation6], %s41
      %s43 = sshll.u32 [#allocation7], 4
      %s44 = int_to_ptr.vmem [resolvable:$true] %s43
      %49 = dma.hbm_to_vmem [thread:$0]  %s2, 1024, %s44, [#allocation6], 64, 64, 4
    $region13: #{tpu_custom_call.1} parent=1 // pred_fallthru
      _
    // Predicated region
    $region14: #{tpu_custom_call.1} parent=1 // pred_check
      _
    $region15: #{tpu_custom_call.1} parent=1 // pred_check_branch
      %51 = sbr.rel (0) target = $region17
    $region16: #{tpu_custom_call.1} parent=1 // pred_region
      %s53 = ssub.s32 1024, 1024
      %54 = vsyncadd [#allocation9], %s53
      %s55 = sshll.u32 [#allocation8], 4
      %s56 = int_to_ptr.vmem [resolvable:$true] %s55
      %61 = dma.hbm_to_vmem [thread:$0]  %s3, 1024, %s56, [#allocation9], 64, 64, 4
    $region17: #{tpu_custom_call.1} parent=1 // pred_fallthru
      _
    // Predicated region
    $region18: #{tpu_custom_call.1} parent=1 // pred_check
      _
    $region19: #{tpu_custom_call.1} parent=1 // pred_check_branch
      %63 = sbr.rel (0) target = $region21
    $region20: #{tpu_custom_call.1} parent=1 // pred_region
      _
    $region21: #{tpu_custom_call.1} parent=1 // pred_fallthru
      _
    // Predicated region
    $region22: #{tpu_custom_call.1} parent=1 // pred_check
      _
    $region23: #{tpu_custom_call.1} parent=1 // pred_check_branch
      %65 = sbr.rel (0) target = $region25
    $region24: #{tpu_custom_call.1} parent=1 // pred_region
      %66 = dma.done [#allocation3], 256
    $region25: #{tpu_custom_call.1} parent=1 // pred_fallthru
      _
    // Predicated region
    $region26: #{tpu_custom_call.1} parent=1 // pred_check
      _
    $region27: #{tpu_custom_call.1} parent=1 // pred_check_branch
      %68 = sbr.rel (0) target = $region29
    $region28: #{tpu_custom_call.1} parent=1 // pred_region
      %69 = dma.done [#allocation6], 1024
    $region29: #{tpu_custom_call.1} parent=1 // pred_fallthru
      _
    // Predicated region
    $region30: #{tpu_custom_call.1} parent=1 // pred_check
      _
    $region31: #{tpu_custom_call.1} parent=1 // pred_check_branch
      %71 = sbr.rel (0) target = $region33
    $region32: #{tpu_custom_call.1} parent=1 // pred_region
      %72 = dma.done [#allocation6], 1024
    $region33: #{tpu_custom_call.1} parent=1 // pred_fallthru
      _
    // Predicated region
    $region34: #{tpu_custom_call.1} parent=1 // pred_check
      _
    $region35: #{tpu_custom_call.1} parent=1 // pred_check_branch
      %74 = sbr.rel (0) target = $region37
    $region36: #{tpu_custom_call.1} parent=1 // pred_region
      %75 = dma.done [#allocation9], 1024
    $region37: #{tpu_custom_call.1} parent=1 // pred_fallthru
      _
    %v77 = vld [vmem:[%s4] sm:$0x7]
    %v78 = vld [vmem:[#allocation2] sm:$0xff]
    %v79 = vld [vmem:[#allocation2 + $0x8] sm:$0xff]
    %v80 = vpack.c.bf16 %v79, %v78
    %v81 = vld [vmem:[#allocation5] sm:$0xf]
    %v82 = vld [vmem:[#allocation5 + $0x4] sm:$0xf]
    %v83 = vld [vmem:[#allocation5 + $0x8] sm:$0xf]
    %v84 = vld [vmem:[#allocation5 + $0xc] sm:$0xf]
    %v85 = vld [vmem:[#allocation5 + $0x10] sm:$0xf]
    %v86 = vld [vmem:[#allocation5 + $0x14] sm:$0xf]
    %v87 = vld [vmem:[#allocation5 + $0x18] sm:$0xf]
    %v88 = vld [vmem:[#allocation5 + $0x1c] sm:$0xf]
    %v89 = vld [vmem:[#allocation5 + $0x20] sm:$0xf]
    %v90 = vld [vmem:[#allocation5 + $0x24] sm:$0xf]
    %v91 = vld [vmem:[#allocation5 + $0x28] sm:$0xf]
    %v92 = vld [vmem:[#allocation5 + $0x2c] sm:$0xf]
    %v93 = vld [vmem:[#allocation5 + $0x30] sm:$0xf]
    %v94 = vld [vmem:[#allocation5 + $0x34] sm:$0xf]
    %v95 = vld [vmem:[#allocation5 + $0x38] sm:$0xf]
    %v96 = vld [vmem:[#allocation5 + $0x3c] sm:$0xf]
    %v97 = vlaneseq
    %v98 = vshrl.u32 %v97, 7
    %v99 = vsub.s32 0, %v98
    %v100 = vrot.slane %v77, %v99
    %v117 = vunpack.c.l.b16 %v81
    %v118 = vunpack.c.l.b16 %v82
    %v119 = vunpack.c.l.b16 %v83
    %v120 = vunpack.c.l.b16 %v84
    %v121 = vunpack.c.l.b16 %v85
    %v122 = vunpack.c.l.b16 %v86
    %v123 = vunpack.c.l.b16 %v87
    %v124 = vunpack.c.l.b16 %v88
    %v125 = vunpack.c.l.b16 %v89
    %v126 = vunpack.c.l.b16 %v90
    %v127 = vunpack.c.l.b16 %v91
    %v128 = vunpack.c.l.b16 %v92
    %v129 = vunpack.c.l.b16 %v93
    %v130 = vunpack.c.l.b16 %v94
    %v131 = vunpack.c.l.b16 %v95
    %v132 = vunpack.c.l.b16 %v96
    %v133 = vpack.c.b16 %v118, %v117
    %v134 = vpack.c.b16 %v120, %v119
    %v135 = vpack.c.b16 %v122, %v121
    %v136 = vpack.c.b16 %v124, %v123
    %v137 = vpack.c.b16 %v126, %v125
    %v138 = vpack.c.b16 %v128, %v127
    %v139 = vpack.c.b16 %v130, %v129
    %v140 = vpack.c.b16 %v132, %v131
    %149 = vmatprep.subr.bf16.mxu0 0
    %150 = vmatpush1.bf16.msra.mxu0 %v140
    %151 = vmatprep.subr.bf16.mxu0 0
    %152 = vmatpush1.bf16.msra.mxu0 %v139
    %153 = vmatprep.subr.bf16.mxu0 0
    %154 = vmatpush1.bf16.msra.mxu0 %v138
    %155 = vmatprep.subr.bf16.mxu0 0
    %156 = vmatpush1.bf16.msra.mxu0 %v137
    %157 = vmatprep.subr.bf16.mxu0 0
    %158 = vmatpush1.bf16.msra.mxu0 %v136
    %159 = vmatprep.subr.bf16.mxu0 0
    %160 = vmatpush1.bf16.msra.mxu0 %v135
    %161 = vmatprep.subr.bf16.mxu0 0
    %162 = vmatpush1.bf16.msra.mxu0 %v134
    %163 = vmatprep.subr.bf16.mxu0 0
    %164 = vmatpush1.bf16.msra.mxu0 %v133
    %165 = vmatprep.subr.bf16.mxu0 0
    %166 = vmatpush2.bf16.msra.mxu0 0
    %167 = vmatprep.subr.bf16.mxu0 0
    %168 = vmatpush2.bf16.msra.mxu0 0
    %169 = vmatprep.subr.bf16.mxu0 0
    %170 = vmatpush2.bf16.msra.mxu0 0
    %171 = vmatprep.subr.bf16.mxu0 0
    %172 = vmatpush2.bf16.msra.mxu0 0
    %173 = vmatprep.subr.bf16.mxu0 0
    %174 = vmatpush2.bf16.msra.mxu0 0
    %175 = vmatprep.subr.bf16.mxu0 0
    %176 = vmatpush2.bf16.msra.mxu0 0
    %177 = vmatprep.subr.bf16.mxu0 0
    %178 = vmatpush2.bf16.msra.mxu0 0
    %179 = vmatprep.subr.bf16.mxu0 0
    %180 = vmatpush2.bf16.msra.mxu0 0
    %181 = vmatprep.mubr.bf16.mxu0 0
    %182 = vmatmul.mubr.bf16.gmra.mxu0 %v80
    %v183 = vpop.f32.mrf.mxu0
    %v184 = vadd.f32 %v100, %v183
    %v185 = vpop.f32.mrf.mxu0
    %v186 = vpop.f32.mrf.mxu0
    %v187 = vadd.f32 %v100, %v186
    %v188 = vpop.f32.mrf.mxu0
    %189 = vdwg.mxu0
    %v190 = vmax.f32 %v184, 0.0
    %v191 = vmax.f32 %v187, 0.0
    %v192 = vpack.c.bf16 %v191, %v190
    %v193 = vld [vmem:[#allocation7] sm:$0xf]
    %v194 = vld [vmem:[#allocation7 + $0x4] sm:$0xf]
    %v195 = vld [vmem:[#allocation7 + $0x8] sm:$0xf]
    %v196 = vld [vmem:[#allocation7 + $0xc] sm:$0xf]
    %v197 = vld [vmem:[#allocation7 + $0x10] sm:$0xf]
    %v198 = vld [vmem:[#allocation7 + $0x14] sm:$0xf]
    %v199 = vld [vmem:[#allocation7 + $0x18] sm:$0xf]
    %v200 = vld [vmem:[#allocation7 + $0x1c] sm:$0xf]
    %v201 = vld [vmem:[#allocation7 + $0x20] sm:$0xf]
    %v202 = vld [vmem:[#allocation7 + $0x24] sm:$0xf]
    %v203 = vld [vmem:[#allocation7 + $0x28] sm:$0xf]
    %v204 = vld [vmem:[#allocation7 + $0x2c] sm:$0xf]
    %v205 = vld [vmem:[#allocation7 + $0x30] sm:$0xf]
    %v206 = vld [vmem:[#allocation7 + $0x34] sm:$0xf]
    %v207 = vld [vmem:[#allocation7 + $0x38] sm:$0xf]
    %v208 = vld [vmem:[#allocation7 + $0x3c] sm:$0xf]
    %v209 = vlaneseq
    %v210 = vshrl.u32 %v209, 7
    %v211 = vsub.s32 1, %v210
    %v212 = vrot.slane %v77, %v211
    %v229 = vunpack.c.l.b16 %v193
    %v230 = vunpack.c.l.b16 %v194
    %v231 = vunpack.c.l.b16 %v195
    %v232 = vunpack.c.l.b16 %v196
    %v233 = vunpack.c.l.b16 %v197
    %v234 = vunpack.c.l.b16 %v198
    %v235 = vunpack.c.l.b16 %v199
    %v236 = vunpack.c.l.b16 %v200
    %v237 = vunpack.c.l.b16 %v201
    %v238 = vunpack.c.l.b16 %v202
    %v239 = vunpack.c.l.b16 %v203
    %v240 = vunpack.c.l.b16 %v204
    %v241 = vunpack.c.l.b16 %v205
    %v242 = vunpack.c.l.b16 %v206
    %v243 = vunpack.c.l.b16 %v207
    %v244 = vunpack.c.l.b16 %v208
    %v245 = vpack.c.b16 %v230, %v229
    %v246 = vpack.c.b16 %v232, %v231
    %v247 = vpack.c.b16 %v234, %v233
    %v248 = vpack.c.b16 %v236, %v235
    %v249 = vpack.c.b16 %v238, %v237
    %v250 = vpack.c.b16 %v240, %v239
    %v251 = vpack.c.b16 %v242, %v241
    %v252 = vpack.c.b16 %v244, %v243
    %261 = vmatprep.subr.bf16.mxu0 0
    %262 = vmatpush1.bf16.msra.mxu0 %v252
    %263 = vmatprep.subr.bf16.mxu0 0
    %264 = vmatpush1.bf16.msra.mxu0 %v251
    %265 = vmatprep.subr.bf16.mxu0 0
    %266 = vmatpush1.bf16.msra.mxu0 %v250
    %267 = vmatprep.subr.bf16.mxu0 0
    %268 = vmatpush1.bf16.msra.mxu0 %v249
    %269 = vmatprep.subr.bf16.mxu0 0
    %270 = vmatpush1.bf16.msra.mxu0 %v248
    %271 = vmatprep.subr.bf16.mxu0 0
    %272 = vmatpush1.bf16.msra.mxu0 %v247
    %273 = vmatprep.subr.bf16.mxu0 0
    %274 = vmatpush1.bf16.msra.mxu0 %v246
    %275 = vmatprep.subr.bf16.mxu0 0
    %276 = vmatpush1.bf16.msra.mxu0 %v245
    %277 = vmatprep.subr.bf16.mxu0 0
    %278 = vmatpush2.bf16.msra.mxu0 0
    %279 = vmatprep.subr.bf16.mxu0 0
    %280 = vmatpush2.bf16.msra.mxu0 0
    %281 = vmatprep.subr.bf16.mxu0 0
    %282 = vmatpush2.bf16.msra.mxu0 0
    %283 = vmatprep.subr.bf16.mxu0 0
    %284 = vmatpush2.bf16.msra.mxu0 0
    %285 = vmatprep.subr.bf16.mxu0 0
    %286 = vmatpush2.bf16.msra.mxu0 0
    %287 = vmatprep.subr.bf16.mxu0 0
    %288 = vmatpush2.bf16.msra.mxu0 0
    %289 = vmatprep.subr.bf16.mxu0 0
    %290 = vmatpush2.bf16.msra.mxu0 0
    %291 = vmatprep.subr.bf16.mxu0 0
    %292 = vmatpush2.bf16.msra.mxu0 0
    %293 = vmatprep.mubr.bf16.mxu0 0
    %294 = vmatmul.mubr.bf16.gmra.mxu0 %v192
    %v295 = vpop.f32.mrf.mxu0
    %v296 = vadd.f32 %v212, %v295
    %v297 = vpop.f32.mrf.mxu0
    %v298 = vpop.f32.mrf.mxu0
    %v299 = vadd.f32 %v212, %v298
    %v300 = vpop.f32.mrf.mxu0
    %301 = vdwg.mxu0
    %v302 = vmax.f32 %v296, 0.0
    %v303 = vmax.f32 %v299, 0.0
    %v304 = vpack.c.bf16 %v303, %v302
    %v305 = vld [vmem:[#allocation8] sm:$0xf]
    %v306 = vld [vmem:[#allocation8 + $0x4] sm:$0xf]
    %v307 = vld [vmem:[#allocation8 + $0x8] sm:$0xf]
    %v308 = vld [vmem:[#allocation8 + $0xc] sm:$0xf]
    %v309 = vld [vmem:[#allocation8 + $0x10] sm:$0xf]
    %v310 = vld [vmem:[#allocation8 + $0x14] sm:$0xf]
    %v311 = vld [vmem:[#allocation8 + $0x18] sm:$0xf]
    %v312 = vld [vmem:[#allocation8 + $0x1c] sm:$0xf]
    %v313 = vld [vmem:[#allocation8 + $0x20] sm:$0xf]
    %v314 = vld [vmem:[#allocation8 + $0x24] sm:$0xf]
    %v315 = vld [vmem:[#allocation8 + $0x28] sm:$0xf]
    %v316 = vld [vmem:[#allocation8 + $0x2c] sm:$0xf]
    %v317 = vld [vmem:[#allocation8 + $0x30] sm:$0xf]
    %v318 = vld [vmem:[#allocation8 + $0x34] sm:$0xf]
    %v319 = vld [vmem:[#allocation8 + $0x38] sm:$0xf]
    %v320 = vld [vmem:[#allocation8 + $0x3c] sm:$0xf]
    %v321 = vlaneseq
    %v322 = vshrl.u32 %v321, 7
    %v323 = vsub.s32 2, %v322
    %v324 = vrot.slane %v77, %v323
    %v341 = vunpack.c.l.b16 %v305
    %v342 = vunpack.c.l.b16 %v306
    %v343 = vunpack.c.l.b16 %v307
    %v344 = vunpack.c.l.b16 %v308
    %v345 = vunpack.c.l.b16 %v309
    %v346 = vunpack.c.l.b16 %v310
    %v347 = vunpack.c.l.b16 %v311
    %v348 = vunpack.c.l.b16 %v312
    %v349 = vunpack.c.l.b16 %v313
    %v350 = vunpack.c.l.b16 %v314
    %v351 = vunpack.c.l.b16 %v315
    %v352 = vunpack.c.l.b16 %v316
    %v353 = vunpack.c.l.b16 %v317
    %v354 = vunpack.c.l.b16 %v318
    %v355 = vunpack.c.l.b16 %v319
    %v356 = vunpack.c.l.b16 %v320
    %v357 = vpack.c.b16 %v342, %v341
    %v358 = vpack.c.b16 %v344, %v343
    %v359 = vpack.c.b16 %v346, %v345
    %v360 = vpack.c.b16 %v348, %v347
    %v361 = vpack.c.b16 %v350, %v349
    %v362 = vpack.c.b16 %v352, %v351
    %v363 = vpack.c.b16 %v354, %v353
    %v364 = vpack.c.b16 %v356, %v355
    %373 = vmatprep.subr.bf16.mxu0 0
    %374 = vmatpush1.bf16.msra.mxu0 %v364
    %375 = vmatprep.subr.bf16.mxu0 0
    %376 = vmatpush1.bf16.msra.mxu0 %v363
    %377 = vmatprep.subr.bf16.mxu0 0
    %378 = vmatpush1.bf16.msra.mxu0 %v362
    %379 = vmatprep.subr.bf16.mxu0 0
    %380 = vmatpush1.bf16.msra.mxu0 %v361
    %381 = vmatprep.subr.bf16.mxu0 0
    %382 = vmatpush1.bf16.msra.mxu0 %v360
    %383 = vmatprep.subr.bf16.mxu0 0
    %384 = vmatpush1.bf16.msra.mxu0 %v359
    %385 = vmatprep.subr.bf16.mxu0 0
    %386 = vmatpush1.bf16.msra.mxu0 %v358
    %387 = vmatprep.subr.bf16.mxu0 0
    %388 = vmatpush1.bf16.msra.mxu0 %v357
    %389 = vmatprep.subr.bf16.mxu0 0
    %390 = vmatpush2.bf16.msra.mxu0 0
    %391 = vmatprep.subr.bf16.mxu0 0
    %392 = vmatpush2.bf16.msra.mxu0 0
    %393 = vmatprep.subr.bf16.mxu0 0
    %394 = vmatpush2.bf16.msra.mxu0 0
    %395 = vmatprep.subr.bf16.mxu0 0
    %396 = vmatpush2.bf16.msra.mxu0 0
    %397 = vmatprep.subr.bf16.mxu0 0
    %398 = vmatpush2.bf16.msra.mxu0 0
    %399 = vmatprep.subr.bf16.mxu0 0
    %400 = vmatpush2.bf16.msra.mxu0 0
    %401 = vmatprep.subr.bf16.mxu0 0
    %402 = vmatpush2.bf16.msra.mxu0 0
    %403 = vmatprep.subr.bf16.mxu0 0
    %404 = vmatpush2.bf16.msra.mxu0 0
    %405 = vmatprep.mubr.bf16.mxu0 0
    %406 = vmatmul.mubr.bf16.gmra.mxu0 %v304
    %v407 = vpop.f32.mrf.mxu0
    %v408 = vadd.f32 %v324, %v407
    %v409 = vpop.f32.mrf.mxu0
    %v410 = vpop.f32.mrf.mxu0
    %v411 = vadd.f32 %v324, %v410
    %v412 = vpop.f32.mrf.mxu0
    %413 = vdwg.mxu0
    %414 = vst [vmem:[#allocation10] sm:$0xff] %v408
    %415 = vst [vmem:[#allocation10 + $0x8] sm:$0xff] %v411
    // Predicated region
    $region38: #{tpu_custom_call.1} parent=1 // pred_check
      _
    $region39: #{tpu_custom_call.1} parent=1 // pred_check_branch
      %417 = sbr.rel (0) target = $region41
    $region40: #{tpu_custom_call.1} parent=1 // pred_region
      %s419 = ssub.s32 256, 256
      %420 = vsyncadd [#allocation4], %s419
      %s421 = sshll.u32 [#allocation10], 4
      %s422 = int_to_ptr.vmem [resolvable:$true] %s421
      %427 = dma.vmem_to_hbm [thread:$0]  %s422, 256, %s5, [#allocation4], 128, 128, 8
    $region41: #{tpu_custom_call.1} parent=1 // pred_fallthru
      _
    // Predicated region
    $region42: #{tpu_custom_call.1} parent=1 // pred_check
      _
    $region43: #{tpu_custom_call.1} parent=1 // pred_check_branch
      %429 = sbr.rel (0) target = $region45
    $region44: #{tpu_custom_call.1} parent=1 // pred_region
      %430 = dma.done [#allocation4], 256
    $region45: #{tpu_custom_call.1} parent=1 // pred_fallthru
      _
    %431 = vsyncpa [#allocation3], 1
    %432 = vsyncpa [#allocation6], 1
    %433 = vsyncpa [#allocation9], 1
    %434 = vsyncpa [#allocation4], 1

</llo_original>
